<compile_context>
chip_gen: v6e
topology: v6e:2x2x1
jax: 0.10.0
libtpu: 0.0.40
codegen_flags: <defaults>
</compile_context>

<pallas_src>
import math

import jax
import jax.numpy as jnp
from jax.experimental import pallas as pl
from jax.experimental.pallas import tpu as pltpu


def _round_up(x, m):
    return ((x + m - 1) // m) * m


def _cdiv(a, b):
    return -(-a // b)


def _vmem_capacity_bytes():
    try:
        info = pltpu.get_tpu_info()
        cap = getattr(info, "vmem_capacity_bytes", None)
        if cap:
            return int(cap)
    except Exception:
        pass
    return 64 * 1024 * 1024  # conservative fallback (v7x-sized)


def _vmem_budget_bytes():
    cap = _vmem_capacity_bytes()
    # ~52 MiB on 64-MiB chips (v7x), ~105 MiB on 128-MiB chips (v5e/v6e).
    return min(int(cap * 0.82), cap - 12 * 1024 * 1024)


def _vmem_estimate(tm, tk, h_pads, out_pad, num_mod, cb):
    """Estimate of the VMEM the pallas_call actually allocates."""
    est = 2 * tm * (num_mod * out_pad) * 4          # output (double-buffered)
    for hp in h_pads:
        est += 2 * tm * tk * cb                      # x stream (2 buffers)
        est += 2 * tk * hp * cb                      # w1 stream (2 buffers)
        est += 2 * 8 * hp * 4                        # b1 resident
        est += 2 * hp * out_pad * cb                 # w2 resident
        est += 2 * 8 * out_pad * 4                   # b2 resident
        est += tm * hp * 4                           # f32 accumulator scratch
    return est


# ---------------------------------------------------------------------------
# Kernel
# ---------------------------------------------------------------------------
def _make_fused_kernel(num_mod, nks, out_pad):
    """Refs: [x_m, w1_m, b1_m, w2_m, b2_m]*M, out, h_acc*M."""
    nk_max = max(nks)

    def kernel(*refs):
        in_refs = refs[: 5 * num_mod]
        o_ref = refs[5 * num_mod]
        h_accs = refs[5 * num_mod + 1:]

        k = pl.program_id(1)

        # Zero the per-modality hidden accumulators at the first K step.
        @pl.when(k == 0)
        def _init():
            for m in range(num_mod):
                h_accs[m][...] = jnp.zeros_like(h_accs[m])

        # Layer-1 partial contraction for this K tile (unrolled over modalities).
        for m in range(num_mod):
            x_ref = in_refs[5 * m + 0]
            w1_ref = in_refs[5 * m + 1]

            def _acc(m=m, x_ref=x_ref, w1_ref=w1_ref):
                h_accs[m][...] += jnp.dot(
                    x_ref[...], w1_ref[...], preferred_element_type=jnp.float32)

            if nks[m] == nk_max:
                _acc()
            else:
                # Modality with fewer K tiles: skip the clamped (repeated) tiles.
                pl.when(k < nks[m])(_acc)

        # Finalize on the last K step: bias + ReLU, one slab-width layer-2
        # matmul per modality, stored straight into its disjoint, 128-aligned
        # column slab of the fused output (implicit concat, no big register
        # accumulator, each slab written exactly once).
        @pl.when(k == nk_max - 1)
        def _finalize():
            for m in range(num_mod):
                b1_ref = in_refs[5 * m + 2]
                w2_ref = in_refs[5 * m + 3]
                b2_ref = in_refs[5 * m + 4]
                h = jnp.maximum(h_accs[m][...] + b1_ref[...], 0.0)
                e = jnp.dot(h.astype(w2_ref.dtype), w2_ref[...],
                            preferred_element_type=jnp.float32)
                o_ref[:, m * out_pad:(m + 1) * out_pad] = (
                    e + b2_ref[...]).astype(o_ref.dtype)

    return kernel


# ---------------------------------------------------------------------------
# One-time parameter packing (pad / cast weights ONCE, not per forward).
# ---------------------------------------------------------------------------
def pack_params(params, *, batch_hint=None, compute_dtype=jnp.bfloat16, tk=None):
    """params: list of (w1 (in,hid), b1 (1,hid), w2 (hid,out), b2 (1,out))."""
    num_mod = len(params)
    input_sizes = [int(p[0].shape[0]) for p in params]
    hidden_sizes = [int(p[0].shape[1]) for p in params]
    out_size = int(params[0][2].shape[1])
    out_pad = _round_up(out_size, 128)
    h_pads = [_round_up(h, 128) for h in hidden_sizes]

    cap = _vmem_capacity_bytes()
    budget = _vmem_budget_bytes()
    cb = jnp.dtype(compute_dtype).itemsize

    # Choose the K tile: big tiles amortize grid overhead on 128-MiB chips,
    # smaller default on 64-MiB v7x; shrink until the VMEM estimate fits.
    if tk is None:
        tk = 1024 if cap >= 96 * 1024 * 1024 else 512
    max_k = max(input_sizes)
    tk = min(_round_up(tk, 128), _round_up(max_k, 128))
    tm_assumed = min(_round_up(batch_hint, 8), 512) if batch_hint else 512
    while tk > 128 and _vmem_estimate(tm_assumed, tk, h_pads, out_pad,
                                      num_mod, cb) > budget:
        tk = max(128, _round_up(tk // 2, 128))

    nks = [_cdiv(k_in, tk) for k_in in input_sizes]

    def pad2(a, rows, cols, dtype):
        a = jnp.asarray(a, dtype)
        r, c = a.shape
        if (r, c) == (rows, cols):
            return a
        return jnp.pad(a, ((0, rows - r), (0, cols - c)))

    w1s, b1s, w2s, b2s = [], [], [], []
    for m, (w1, b1, w2, b2) in enumerate(params):
        kp = nks[m] * tk
        hp = h_pads[m]
        w1s.append(pad2(w1, kp, hp, compute_dtype))
        b1s.append(pad2(jnp.reshape(b1, (1, -1)), 1, hp, jnp.float32))
        w2s.append(pad2(w2, hp, out_pad, compute_dtype))
        b2s.append(pad2(jnp.reshape(b2, (1, -1)), 1, out_pad, jnp.float32))

    return dict(num_mod=num_mod, input_sizes=input_sizes,
                hidden_sizes=hidden_sizes, out_size=out_size, out_pad=out_pad,
                h_pads=h_pads, tk=tk, nks=nks, compute_dtype=compute_dtype,
                w1=w1s, b1=b1s, w2=w2s, b2=b2s)


# ---------------------------------------------------------------------------
# Forward
# ---------------------------------------------------------------------------
def multi_embedding_forward(x_dict, packed):
    """MultiEmbeddingNetwork.forward as a single fused Pallas call.

    x_dict: dict name -> (batch, input_size); key order = modality order
            (matches zip(x.keys(), self.embedding_networks)).
    packed: output of pack_params().
    Returns (batch, num_mod * output_size) float32 fused embedding.
    """
    names = list(x_dict.keys())
    num_mod = packed["num_mod"]
    assert len(names) == num_mod and num_mod >= 1
    tk, nks = packed["tk"], packed["nks"]
    h_pads, out_pad = packed["h_pads"], packed["out_pad"]
    out_size = packed["out_size"]
    cdt = packed["compute_dtype"]
    cb = jnp.dtype(cdt).itemsize
    nk = max(nks)

    batch = x_dict[names[0]].shape[0]
    # Cover the whole batch in one tile when possible (<=512 rows) so the
    # W1 HBM stream is read exactly once per forward.
    tm = min(_round_up(batch, 8), 512)
    b_pad = _round_up(batch, tm)
    n_cols = num_mod * out_pad

    args, in_specs = [], []
    flops = 0
    bytes_accessed = 0
    for m, name in enumerate(names):
        x = x_dict[name]
        k_in = packed["input_sizes"][m]
        hid = packed["hidden_sizes"][m]
        assert x.shape == (batch, k_in), (x.shape, (batch, k_in))
        kp = nks[m] * tk
        hp = h_pads[m]

        xp = x.astype(cdt)
        if xp.shape != (b_pad, kp):
            xp = jnp.pad(xp, ((0, b_pad - batch), (0, kp - k_in)))

        w1p, b1p = packed["w1"][m], packed["b1"][m]
        w2p, b2p = packed["w2"][m], packed["b2"][m]

        if nks[m] == nk:
            x_map = lambda i, k: (i, k)
            w1_map = lambda i, k: (k, 0)
        else:
            x_map = lambda i, k, n=nks[m]: (i, jnp.minimum(k, n - 1))
            w1_map = lambda i, k, n=nks[m]: (jnp.minimum(k, n - 1), 0)

        args += [xp, w1p, b1p, w2p, b2p]
        in_specs += [
            pl.BlockSpec((tm, tk), x_map),                    # streamed per (i, k)
            pl.BlockSpec((tk, hp), w1_map),                   # streamed per k
            pl.BlockSpec((1, hp), lambda i, k: (0, 0)),       # resident
            pl.BlockSpec((hp, out_pad), lambda i, k: (0, 0)), # resident (slab W2)
            pl.BlockSpec((1, out_pad), lambda i, k: (0, 0)),  # resident
        ]
        flops += 2 * batch * (k_in * hid + hid * out_size)
        bytes_accessed += (xp.size * xp.dtype.itemsize
                           + w1p.size * w1p.dtype.itemsize
                           + w2p.size * w2p.dtype.itemsize
                           + b1p.size * 4 + b2p.size * 4)
    bytes_accessed += b_pad * n_cols * 4

    est = _vmem_estimate(tm, tk, h_pads, out_pad, num_mod, cb)
    vmem_limit = int(min(_vmem_budget_bytes(),
                         max(int(est * 1.3), 32 * 1024 * 1024)))

    # TODO(synk): on v7x (2 TensorCores) a single-batch-tile grid leaves one
    # core idle; splitting the batch tile trades a second W1 stream for 2-TC
    # parallelism and is only a win when compute-bound.
    grid = (b_pad // tm, nk)
    out = pl.pallas_call(
        _make_fused_kernel(num_mod, nks, out_pad),
        out_shape=jax.ShapeDtypeStruct((b_pad, n_cols), jnp.float32),
        grid=grid,
        in_specs=in_specs,
        out_specs=pl.BlockSpec((tm, n_cols), lambda i, k: (i, 0)),
        scratch_shapes=[pltpu.VMEM((tm, hp), jnp.float32) for hp in h_pads],
        compiler_params=pltpu.CompilerParams(
            dimension_semantics=("parallel", "arbitrary"),
            vmem_limit_bytes=vmem_limit),
        cost_estimate=pl.CostEstimate(
            flops=flops, transcendentals=0, bytes_accessed=bytes_accessed),
    )(*args)

    out = out[:batch]
    if out_pad != out_size:
        out = out.reshape(batch, num_mod, out_pad)[:, :, :out_size]
        out = out.reshape(batch, num_mod * out_size)
    return out


# ---------------------------------------------------------------------------
# Deterministic init mimicking torch.nn.Linear (uniform +-1/sqrt(in)); weights
# stored (in, out) so the kernel computes x @ W + b.
def init_linear_params(key, in_size, out_size, dtype=jnp.float32):
    k_w, k_b = jax.random.split(key)
    bound = 1.0 / math.sqrt(in_size)
    w = jax.random.uniform(k_w, (in_size, out_size), dtype, -bound, bound)
    b = jax.random.uniform(k_b, (1, out_size), dtype, -bound, bound)
    return w, b


def init_multi_embedding_params(key, input_sizes, hidden_sizes, output_size):
    params = []
    for i, (in_size, hid_size) in enumerate(zip(input_sizes, hidden_sizes)):
        k1, k2 = jax.random.split(jax.random.fold_in(key, i))
        w1, b1 = init_linear_params(k1, in_size, hid_size)
        w2, b2 = init_linear_params(k2, hid_size, output_size)
        params.append((w1, b1, w2, b2))
    return params


if __name__ == "__main__":
    key = jax.random.PRNGKey(0)

    batch = 8
    input_sizes = [16, 32]     # one entry per modality
    hidden_sizes = [32, 64]
    output_size = 32           # per-modality embedding; fused = 2 * 32 = 64

    k_params, k_x0, k_x1 = jax.random.split(key, 3)
    params = init_multi_embedding_params(
        k_params, input_sizes, hidden_sizes, output_size)

    # One-time padding / casting of all weights (not repeated per forward).
    packed = pack_params(params, batch_hint=batch)

    x = {
        "omics_a": jax.random.normal(k_x0, (batch, input_sizes[0]), jnp.float32),
        "omics_b": jax.random.normal(k_x1, (batch, input_sizes[1]), jnp.float32),
    }

    fused = multi_embedding_forward(x, packed)
    fused = jax.block_until_ready(fused)
    assert fused.shape == (batch, output_size * len(input_sizes)), fused.shape

    # Pure-JAX reference with the same bf16 MXU operands / f32 accumulation.
    # (bf16 operands deviate from PyTorch's f32 matmuls; 1e-2 tolerance.)
    def ref_forward(x_dict, ps, compute_dtype=jnp.bfloat16):
        outs = []
        for name, (w1, b1, w2, b2) in zip(x_dict.keys(), ps):
            xm = x_dict[name].astype(compute_dtype)
            h = jnp.maximum(
                jnp.dot(xm, w1.astype(compute_dtype),
                        preferred_element_type=jnp.float32) + b1, 0.0)
            e = jnp.dot(h.astype(compute_dtype), w2.astype(compute_dtype),
                        preferred_element_type=jnp.float32) + b2
            outs.append(e)
        return jnp.concatenate(outs, axis=-1)

    ref = ref_forward(x, params)
    err = float(jnp.max(jnp.abs(fused - ref)))
    assert err < 1e-2, f"max abs err {err}"

    print("KERNEL_OK")
</pallas_src>

<mosaic_0001>
module attributes {stable_mosaic.version = 11 : i64} {
  func.func @kernel(%arg0: i32, %arg1: i32, %arg2: memref<8x128xbf16, #tpu.memory_space<vmem>>, %arg3: memref<128x128xbf16, #tpu.memory_space<vmem>>, %arg4: memref<1x128xf32, #tpu.memory_space<vmem>>, %arg5: memref<128x128xbf16, #tpu.memory_space<vmem>>, %arg6: memref<1x128xf32, #tpu.memory_space<vmem>>, %arg7: memref<8x128xbf16, #tpu.memory_space<vmem>>, %arg8: memref<128x128xbf16, #tpu.memory_space<vmem>>, %arg9: memref<1x128xf32, #tpu.memory_space<vmem>>, %arg10: memref<128x128xbf16, #tpu.memory_space<vmem>>, %arg11: memref<1x128xf32, #tpu.memory_space<vmem>>, %arg12: memref<8x256xf32, #tpu.memory_space<vmem>>, %arg13: memref<8x128xf32, #tpu.memory_space<vmem>>, %arg14: memref<8x128xf32, #tpu.memory_space<vmem>>) attributes {dimension_semantics = [#tpu.dimension_semantics<parallel>, #tpu.dimension_semantics<arbitrary>], iteration_bounds = array<i64: 1, 1>, scalar_prefetch = 0 : i64, scratch_operands = 2 : i64, tpu.core_type = #tpu.core_type<tc>, window_params = [{transform_indices = @transform_0, window_bounds = array<i64: 8, 128>}, {transform_indices = @transform_1, window_bounds = array<i64: 128, 128>}, {pipeline_mode = #tpu.pipeline_mode<synchronous>, transform_indices = @transform_2, window_bounds = array<i64: 1, 128>}, {pipeline_mode = #tpu.pipeline_mode<synchronous>, transform_indices = @transform_3, window_bounds = array<i64: 128, 128>}, {pipeline_mode = #tpu.pipeline_mode<synchronous>, transform_indices = @transform_4, window_bounds = array<i64: 1, 128>}, {transform_indices = @transform_5, window_bounds = array<i64: 8, 128>}, {transform_indices = @transform_6, window_bounds = array<i64: 128, 128>}, {pipeline_mode = #tpu.pipeline_mode<synchronous>, transform_indices = @transform_7, window_bounds = array<i64: 1, 128>}, {pipeline_mode = #tpu.pipeline_mode<synchronous>, transform_indices = @transform_8, window_bounds = array<i64: 128, 128>}, {pipeline_mode = #tpu.pipeline_mode<synchronous>, transform_indices = @transform_9, window_bounds = array<i64: 1, 128>}, {transform_indices = @transform_10, window_bounds = array<i64: 8, 256>}]} {
    %c0_i32 = arith.constant 0 : i32
    %0 = arith.cmpi eq, %arg1, %c0_i32 : i32
    %1 = arith.extui %0 : i1 to i32
    %c0_i32_0 = arith.constant 0 : i32
    %2 = arith.cmpi ne, %1, %c0_i32_0 : i32
    scf.if %2 {
      %cst_19 = arith.constant 0.000000e+00 : f32
      %18 = vector.broadcast %cst_19 : f32 to vector<8x128xf32>
      %c0_20 = arith.constant 0 : index
      %c0_21 = arith.constant 0 : index
      %19 = vector.load %arg13[%c0_20, %c0_21] : memref<8x128xf32, #tpu.memory_space<vmem>>, vector<8x128xf32>
      tpu.vector_store %arg13[%c0_20, %c0_21], %18 {strides = array<i32>} : memref<8x128xf32, #tpu.memory_space<vmem>>, vector<8x128xf32>,
      %cst_22 = arith.constant 0.000000e+00 : f32
      %20 = vector.broadcast %cst_22 : f32 to vector<8x128xf32>
      %c0_23 = arith.constant 0 : index
      %c0_24 = arith.constant 0 : index
      %21 = vector.load %arg14[%c0_23, %c0_24] : memref<8x128xf32, #tpu.memory_space<vmem>>, vector<8x128xf32>
      tpu.vector_store %arg14[%c0_23, %c0_24], %20 {strides = array<i32>} : memref<8x128xf32, #tpu.memory_space<vmem>>, vector<8x128xf32>,
    } else {
    }
    %c0 = arith.constant 0 : index
    %c0_1 = arith.constant 0 : index
    %3 = vector.load %arg13[%c0, %c0_1] : memref<8x128xf32, #tpu.memory_space<vmem>>, vector<8x128xf32>
    %c0_2 = arith.constant 0 : index
    %c0_3 = arith.constant 0 : index
    %4 = vector.load %arg2[%c0_2, %c0_3] : memref<8x128xbf16, #tpu.memory_space<vmem>>, vector<8x128xbf16>
    %c0_4 = arith.constant 0 : index
    %c0_5 = arith.constant 0 : index
    %5 = vector.load %arg3[%c0_4, %c0_5] : memref<128x128xbf16, #tpu.memory_space<vmem>>, vector<128x128xbf16>
    %cst = arith.constant dense<0.000000e+00> : vector<8x128xf32>
    %6 = tpu.matmul %4, %5, %cst {dimension_numbers = #tpu.dot_dimension_numbers<[1], [0], [0], [1], [0, 0, 1, 1], [], []>} : vector<8x128xbf16>, vector<128x128xbf16>, vector<8x128xf32> -> vector<8x128xf32>
    %7 = arith.addf %3, %6 : vector<8x128xf32>
    %c0_6 = arith.constant 0 : index
    %c0_7 = arith.constant 0 : index
    %8 = vector.load %arg13[%c0_6, %c0_7] : memref<8x128xf32, #tpu.memory_space<vmem>>, vector<8x128xf32>
    tpu.vector_store %arg13[%c0_6, %c0_7], %7 {strides = array<i32>} : memref<8x128xf32, #tpu.memory_space<vmem>>, vector<8x128xf32>,
    %c0_8 = arith.constant 0 : index
    %c0_9 = arith.constant 0 : index
    %9 = vector.load %arg14[%c0_8, %c0_9] : memref<8x128xf32, #tpu.memory_space<vmem>>, vector<8x128xf32>
    %c0_10 = arith.constant 0 : index
    %c0_11 = arith.constant 0 : index
    %10 = vector.load %arg7[%c0_10, %c0_11] : memref<8x128xbf16, #tpu.memory_space<vmem>>, vector<8x128xbf16>
    %c0_12 = arith.constant 0 : index
    %c0_13 = arith.constant 0 : index
    %11 = vector.load %arg8[%c0_12, %c0_13] : memref<128x128xbf16, #tpu.memory_space<vmem>>, vector<128x128xbf16>
    %cst_14 = arith.constant dense<0.000000e+00> : vector<8x128xf32>
    %12 = tpu.matmul %10, %11, %cst_14 {dimension_numbers = #tpu.dot_dimension_numbers<[1], [0], [0], [1], [0, 0, 1, 1], [], []>} : vector<8x128xbf16>, vector<128x128xbf16>, vector<8x128xf32> -> vector<8x128xf32>
    %13 = arith.addf %9, %12 : vector<8x128xf32>
    %c0_15 = arith.constant 0 : index
    %c0_16 = arith.constant 0 : index
    %14 = vector.load %arg14[%c0_15, %c0_16] : memref<8x128xf32, #tpu.memory_space<vmem>>, vector<8x128xf32>
    tpu.vector_store %arg14[%c0_15, %c0_16], %13 {strides = array<i32>} : memref<8x128xf32, #tpu.memory_space<vmem>>, vector<8x128xf32>,
    %c0_i32_17 = arith.constant 0 : i32
    %15 = arith.cmpi eq, %arg1, %c0_i32_17 : i32
    %16 = arith.extui %15 : i1 to i32
    %c0_i32_18 = arith.constant 0 : i32
    %17 = arith.cmpi ne, %16, %c0_i32_18 : i32
    scf.if %17 {
      %c0_19 = arith.constant 0 : index
      %c0_20 = arith.constant 0 : index
      %18 = vector.load %arg13[%c0_19, %c0_20] : memref<8x128xf32, #tpu.memory_space<vmem>>, vector<8x128xf32>
      %c0_21 = arith.constant 0 : index
      %c0_22 = arith.constant 0 : index
      %19 = vector.load %arg4[%c0_21, %c0_22] : memref<1x128xf32, #tpu.memory_space<vmem>>, vector<1x128xf32>
      %20 = vector.broadcast %19 : vector<1x128xf32> to vector<8x128xf32>
      %21 = arith.addf %18, %20 : vector<8x128xf32>
      %cst_23 = arith.constant 0.000000e+00 : f32
      %22 = vector.broadcast %cst_23 : f32 to vector<8x128xf32>
      %23 = arith.maximumf %21, %22 : vector<8x128xf32>
      %24 = arith.truncf %23 : vector<8x128xf32> to vector<8x128xbf16>
      %c0_24 = arith.constant 0 : index
      %c0_25 = arith.constant 0 : index
      %25 = vector.load %arg5[%c0_24, %c0_25] : memref<128x128xbf16, #tpu.memory_space<vmem>>, vector<128x128xbf16>
      %cst_26 = arith.constant dense<0.000000e+00> : vector<8x128xf32>
      %26 = tpu.matmul %24, %25, %cst_26 {dimension_numbers = #tpu.dot_dimension_numbers<[1], [0], [0], [1], [0, 0, 1, 1], [], []>} : vector<8x128xbf16>, vector<128x128xbf16>, vector<8x128xf32> -> vector<8x128xf32>
      %c0_27 = arith.constant 0 : index
      %c0_28 = arith.constant 0 : index
      %27 = vector.load %arg6[%c0_27, %c0_28] : memref<1x128xf32, #tpu.memory_space<vmem>>, vector<1x128xf32>
      %28 = vector.broadcast %27 : vector<1x128xf32> to vector<8x128xf32>
      %29 = arith.addf %26, %28 : vector<8x128xf32>
      %c0_29 = arith.constant 0 : index
      %c0_30 = arith.constant 0 : index
      %30 = vector.load %arg12[%c0_29, %c0_30] : memref<8x256xf32, #tpu.memory_space<vmem>>, vector<8x128xf32>
      tpu.vector_store %arg12[%c0_29, %c0_30], %29 {strides = array<i32>} : memref<8x256xf32, #tpu.memory_space<vmem>>, vector<8x128xf32>,
      %c0_31 = arith.constant 0 : index
      %c0_32 = arith.constant 0 : index
      %31 = vector.load %arg14[%c0_31, %c0_32] : memref<8x128xf32, #tpu.memory_space<vmem>>, vector<8x128xf32>
      %c0_33 = arith.constant 0 : index
      %c0_34 = arith.constant 0 : index
      %32 = vector.load %arg9[%c0_33, %c0_34] : memref<1x128xf32, #tpu.memory_space<vmem>>, vector<1x128xf32>
      %33 = vector.broadcast %32 : vector<1x128xf32> to vector<8x128xf32>
      %34 = arith.addf %31, %33 : vector<8x128xf32>
      %cst_35 = arith.constant 0.000000e+00 : f32
      %35 = vector.broadcast %cst_35 : f32 to vector<8x128xf32>
      %36 = arith.maximumf %34, %35 : vector<8x128xf32>
      %37 = arith.truncf %36 : vector<8x128xf32> to vector<8x128xbf16>
      %c0_36 = arith.constant 0 : index
      %c0_37 = arith.constant 0 : index
      %38 = vector.load %arg10[%c0_36, %c0_37] : memref<128x128xbf16, #tpu.memory_space<vmem>>, vector<128x128xbf16>
      %cst_38 = arith.constant dense<0.000000e+00> : vector<8x128xf32>
      %39 = tpu.matmul %37, %38, %cst_38 {dimension_numbers = #tpu.dot_dimension_numbers<[1], [0], [0], [1], [0, 0, 1, 1], [], []>} : vector<8x128xbf16>, vector<128x128xbf16>, vector<8x128xf32> -> vector<8x128xf32>
      %c0_39 = arith.constant 0 : index
      %c0_40 = arith.constant 0 : index
      %40 = vector.load %arg11[%c0_39, %c0_40] : memref<1x128xf32, #tpu.memory_space<vmem>>, vector<1x128xf32>
      %41 = vector.broadcast %40 : vector<1x128xf32> to vector<8x128xf32>
      %42 = arith.addf %39, %41 : vector<8x128xf32>
      %c0_41 = arith.constant 0 : index
      %c128 = arith.constant 128 : index
      %43 = vector.load %arg12[%c0_41, %c128] : memref<8x256xf32, #tpu.memory_space<vmem>>, vector<8x128xf32>
      tpu.vector_store %arg12[%c0_41, %c128], %42 {strides = array<i32>} : memref<8x256xf32, #tpu.memory_space<vmem>>, vector<8x128xf32>,
    } else {
    }
    return
  }
  func.func @transform_0(%arg0: i32, %arg1: i32) -> (i32, i32) {
    %c0_i32 = arith.constant 0 : i32
    return %arg0, %arg1 : i32, i32
  }
  func.func @transform_1(%arg0: i32, %arg1: i32) -> (i32, i32) {
    %c0_i32 = arith.constant 0 : i32
    %c0_i32_0 = arith.constant 0 : i32
    return %arg1, %c0_i32 : i32, i32
  }
  func.func @transform_2(%arg0: i32, %arg1: i32) -> (i32, i32) {
    %c0_i32 = arith.constant 0 : i32
    %c0_i32_0 = arith.constant 0 : i32
    %c0_i32_1 = arith.constant 0 : i32
    return %c0_i32, %c0_i32_0 : i32, i32
  }
  func.func @transform_3(%arg0: i32, %arg1: i32) -> (i32, i32) {
    %c0_i32 = arith.constant 0 : i32
    %c0_i32_0 = arith.constant 0 : i32
    %c0_i32_1 = arith.constant 0 : i32
    return %c0_i32, %c0_i32_0 : i32, i32
  }
  func.func @transform_4(%arg0: i32, %arg1: i32) -> (i32, i32) {
    %c0_i32 = arith.constant 0 : i32
    %c0_i32_0 = arith.constant 0 : i32
    %c0_i32_1 = arith.constant 0 : i32
    return %c0_i32, %c0_i32_0 : i32, i32
  }
  func.func @transform_5(%arg0: i32, %arg1: i32) -> (i32, i32) {
    %c0_i32 = arith.constant 0 : i32
    return %arg0, %arg1 : i32, i32
  }
  func.func @transform_6(%arg0: i32, %arg1: i32) -> (i32, i32) {
    %c0_i32 = arith.constant 0 : i32
    %c0_i32_0 = arith.constant 0 : i32
    return %arg1, %c0_i32 : i32, i32
  }
  func.func @transform_7(%arg0: i32, %arg1: i32) -> (i32, i32) {
    %c0_i32 = arith.constant 0 : i32
    %c0_i32_0 = arith.constant 0 : i32
    %c0_i32_1 = arith.constant 0 : i32
    return %c0_i32, %c0_i32_0 : i32, i32
  }
  func.func @transform_8(%arg0: i32, %arg1: i32) -> (i32, i32) {
    %c0_i32 = arith.constant 0 : i32
    %c0_i32_0 = arith.constant 0 : i32
    %c0_i32_1 = arith.constant 0 : i32
    return %c0_i32, %c0_i32_0 : i32, i32
  }
  func.func @transform_9(%arg0: i32, %arg1: i32) -> (i32, i32) {
    %c0_i32 = arith.constant 0 : i32
    %c0_i32_0 = arith.constant 0 : i32
    %c0_i32_1 = arith.constant 0 : i32
    return %c0_i32, %c0_i32_0 : i32, i32
  }
  func.func @transform_10(%arg0: i32, %arg1: i32) -> (i32, i32) {
    %c0_i32 = arith.constant 0 : i32
    %c0_i32_0 = arith.constant 0 : i32
    return %arg0, %c0_i32 : i32, i32
  }
}

</mosaic_0001>

<llo_original>
// kernel: tpu_custom_call.1
$region0: #{tpu_custom_call.1}
  #allocation0 [shape = 'u32[]', space=smem, size = 0x4, offset = 0x4, fixed_abs, tag = 'smem constant byte address 0x4 - core index']
  #allocation1 [shape = 'u32[144,128]{1,0:T(1,128)}', space=vmem, size = 0x12000, scoped, tag = 'internal scratch']
  #allocation2 [shape = 'f32[8,128]{1,0:T(8,128)}', space=vmem, size = 0x1000, scoped, tag = 'scratch operand']
  #allocation3 [shape = 'f32[8,128]{1,0:T(8,128)}', space=vmem, size = 0x1000, scoped, tag = 'scratch operand']
  %s0 = inlined_call_operand.hbm [shape: bf16[8,128], index: 0, kind: input, shape index: {}]
  %s1 = inlined_call_operand.hbm [shape: bf16[128,128], index: 1, kind: input, shape index: {}]
  %s2 = inlined_call_operand.vmem [shape: f32[1,128], index: 2, kind: input, shape index: {}]
  %s3 = inlined_call_operand.hbm [shape: bf16[128,128], index: 3, kind: input, shape index: {}]
  %s4 = inlined_call_operand.vmem [shape: f32[1,128], index: 4, kind: input, shape index: {}]
  %s5 = inlined_call_operand.vmem [shape: bf16[8,128], index: 5, kind: input, shape index: {}]
  %s6 = inlined_call_operand.hbm [shape: bf16[128,128], index: 6, kind: input, shape index: {}]
  %s7 = inlined_call_operand.vmem [shape: f32[1,128], index: 7, kind: input, shape index: {}]
  %s8 = inlined_call_operand.hbm [shape: bf16[128,128], index: 8, kind: input, shape index: {}]
  %s9 = inlined_call_operand.vmem [shape: f32[1,128], index: 9, kind: input, shape index: {}]
  %s10 = inlined_call_operand.hbm [shape: f32[8,256], index: 10, kind: output, shape index: {}]
  %s11 = sld [smem:[#allocation0]]
  $region78: #{tpu_custom_call.1} parent=0
    _
  %s13 = ssub.s32 1, %s11
  %s14 = scalar_select 0, %s13, %s11
  $region1: #{tpu_custom_call.1} parent=0
    #allocation4 [shape = 'u8[2048]{0}', space=vmem, size = 0x800, scoped, tag = 'input window, operand 0, single buffered']
    #allocation5 [shape = 's32[1]{0}', space=sflag, size = 0x4, scoped, tag = 'scoped memory for tpu_custom_call.1']
    #allocation6 [shape = 's32[1]{0}', space=sflag, size = 0x4, scoped, tag = 'scoped memory for tpu_custom_call.1']
    #allocation7 [shape = 'u8[32768]{0}', space=vmem, size = 0x8000, scoped, tag = 'input window, operand 1, single buffered']
    #allocation8 [shape = 's32[1]{0}', space=sflag, size = 0x4, scoped, tag = 'scoped memory for tpu_custom_call.1']
    #allocation9 [shape = 'u8[32768]{0}', space=vmem, size = 0x8000, scoped, tag = 'input window, operand 3, single buffered']
    #allocation10 [shape = 'u8[32768]{0}', space=vmem, size = 0x8000, scoped, tag = 'input window, operand 6, single buffered']
    #allocation11 [shape = 's32[1]{0}', space=sflag, size = 0x4, scoped, tag = 'scoped memory for tpu_custom_call.1']
    #allocation12 [shape = 'u8[32768]{0}', space=vmem, size = 0x8000, scoped, tag = 'input window, operand 8, single buffered']
    #allocation13 [shape = 'u8[8192]{0}', space=vmem, size = 0x2000, scoped, tag = 'output window, operand 0, single buffered']
    %15 = vsyncpa [#allocation5], 0
    %16 = vsyncpa [#allocation8], 0
    %17 = vsyncpa [#allocation11], 0
    %18 = vsyncpa [#allocation6], 0
    // Predicated region
    $region2: #{tpu_custom_call.1} parent=1 // pred_check
      _
    $region3: #{tpu_custom_call.1} parent=1 // pred_check_branch
      %20 = sbr.rel (0) target = $region5
    $region4: #{tpu_custom_call.1} parent=1 // pred_region
      %s22 = ssub.s32 64, 64
      %23 = vsyncadd [#allocation5], %s22
      %s25 = sshll.u32 [#allocation4], 4
      %s26 = int_to_ptr.vmem [resolvable:$true] %s25
      %28 = dma.hbm_to_vmem [thread:$0]  %s0, 64, %s26, [#allocation5]
    $region5: #{tpu_custom_call.1} parent=1 // pred_fallthru
      _
    // Predicated region
    $region6: #{tpu_custom_call.1} parent=1 // pred_check
      _
    $region7: #{tpu_custom_call.1} parent=1 // pred_check_branch
      %30 = sbr.rel (0) target = $region9
    $region8: #{tpu_custom_call.1} parent=1 // pred_region
      %s32 = ssub.s32 1024, 1024
      %33 = vsyncadd [#allocation8], %s32
      %s34 = sshll.u32 [#allocation7], 4
      %s35 = int_to_ptr.vmem [resolvable:$true] %s34
      %40 = dma.hbm_to_vmem [thread:$0]  %s1, 1024, %s35, [#allocation8], 64, 64, 4
    $region9: #{tpu_custom_call.1} parent=1 // pred_fallthru
      _
    // Predicated region
    $region10: #{tpu_custom_call.1} parent=1 // pred_check
      _
    $region11: #{tpu_custom_call.1} parent=1 // pred_check_branch
      %42 = sbr.rel (0) target = $region13
    $region12: #{tpu_custom_call.1} parent=1 // pred_region
      _
    $region13: #{tpu_custom_call.1} parent=1 // pred_fallthru
      _
    // Predicated region
    $region14: #{tpu_custom_call.1} parent=1 // pred_check
      _
    $region15: #{tpu_custom_call.1} parent=1 // pred_check_branch
      %44 = sbr.rel (0) target = $region17
    $region16: #{tpu_custom_call.1} parent=1 // pred_region
      %s46 = ssub.s32 1024, 1024
      %47 = vsyncadd [#allocation8], %s46
      %s48 = sshll.u32 [#allocation9], 4
      %s49 = int_to_ptr.vmem [resolvable:$true] %s48
      %54 = dma.hbm_to_vmem [thread:$0]  %s3, 1024, %s49, [#allocation8], 64, 64, 4
    $region17: #{tpu_custom_call.1} parent=1 // pred_fallthru
      _
    // Predicated region
    $region18: #{tpu_custom_call.1} parent=1 // pred_check
      _
    $region19: #{tpu_custom_call.1} parent=1 // pred_check_branch
      %56 = sbr.rel (0) target = $region21
    $region20: #{tpu_custom_call.1} parent=1 // pred_region
      _
    $region21: #{tpu_custom_call.1} parent=1 // pred_fallthru
      _
    // Predicated region
    $region22: #{tpu_custom_call.1} parent=1 // pred_check
      _
    $region23: #{tpu_custom_call.1} parent=1 // pred_check_branch
      %58 = sbr.rel (0) target = $region25
    $region24: #{tpu_custom_call.1} parent=1 // pred_region
      _
    $region25: #{tpu_custom_call.1} parent=1 // pred_fallthru
      _
    // Predicated region
    $region26: #{tpu_custom_call.1} parent=1 // pred_check
      _
    $region27: #{tpu_custom_call.1} parent=1 // pred_check_branch
      %60 = sbr.rel (0) target = $region29
    $region28: #{tpu_custom_call.1} parent=1 // pred_region
      %s62 = ssub.s32 1024, 1024
      %63 = vsyncadd [#allocation11], %s62
      %s64 = sshll.u32 [#allocation10], 4
      %s65 = int_to_ptr.vmem [resolvable:$true] %s64
      %70 = dma.hbm_to_vmem [thread:$0]  %s6, 1024, %s65, [#allocation11], 64, 64, 4
    $region29: #{tpu_custom_call.1} parent=1 // pred_fallthru
      _
    // Predicated region
    $region30: #{tpu_custom_call.1} parent=1 // pred_check
      _
    $region31: #{tpu_custom_call.1} parent=1 // pred_check_branch
      %72 = sbr.rel (0) target = $region33
    $region32: #{tpu_custom_call.1} parent=1 // pred_region
      _
    $region33: #{tpu_custom_call.1} parent=1 // pred_fallthru
      _
    // Predicated region
    $region34: #{tpu_custom_call.1} parent=1 // pred_check
      _
    $region35: #{tpu_custom_call.1} parent=1 // pred_check_branch
      %74 = sbr.rel (0) target = $region37
    $region36: #{tpu_custom_call.1} parent=1 // pred_region
      %s76 = ssub.s32 1024, 1024
      %77 = vsyncadd [#allocation11], %s76
      %s78 = sshll.u32 [#allocation12], 4
      %s79 = int_to_ptr.vmem [resolvable:$true] %s78
      %84 = dma.hbm_to_vmem [thread:$0]  %s8, 1024, %s79, [#allocation11], 64, 64, 4
    $region37: #{tpu_custom_call.1} parent=1 // pred_fallthru
      _
    // Predicated region
    $region38: #{tpu_custom_call.1} parent=1 // pred_check
      _
    $region39: #{tpu_custom_call.1} parent=1 // pred_check_branch
      %86 = sbr.rel (0) target = $region41
    $region40: #{tpu_custom_call.1} parent=1 // pred_region
      _
    $region41: #{tpu_custom_call.1} parent=1 // pred_fallthru
      _
    // Predicated region
    $region42: #{tpu_custom_call.1} parent=1 // pred_check
      _
    $region43: #{tpu_custom_call.1} parent=1 // pred_check_branch
      %88 = sbr.rel (0) target = $region45
    $region44: #{tpu_custom_call.1} parent=1 // pred_region
      %89 = dma.done [#allocation5], 64
    $region45: #{tpu_custom_call.1} parent=1 // pred_fallthru
      _
    // Predicated region
    $region46: #{tpu_custom_call.1} parent=1 // pred_check
      _
    $region47: #{tpu_custom_call.1} parent=1 // pred_check_branch
      %91 = sbr.rel (0) target = $region49
    $region48: #{tpu_custom_call.1} parent=1 // pred_region
      %92 = dma.done [#allocation8], 1024
    $region49: #{tpu_custom_call.1} parent=1 // pred_fallthru
      _
    // Predicated region
    $region50: #{tpu_custom_call.1} parent=1 // pred_check
      _
    $region51: #{tpu_custom_call.1} parent=1 // pred_check_branch
      %94 = sbr.rel (0) target = $region53
    $region52: #{tpu_custom_call.1} parent=1 // pred_region
      %95 = dma.done [#allocation8], 1024
    $region53: #{tpu_custom_call.1} parent=1 // pred_fallthru
      _
    // Predicated region
    $region54: #{tpu_custom_call.1} parent=1 // pred_check
      _
    $region55: #{tpu_custom_call.1} parent=1 // pred_check_branch
      %97 = sbr.rel (0) target = $region57
    $region56: #{tpu_custom_call.1} parent=1 // pred_region
      %98 = dma.done [#allocation11], 1024
    $region57: #{tpu_custom_call.1} parent=1 // pred_fallthru
      _
    // Predicated region
    $region58: #{tpu_custom_call.1} parent=1 // pred_check
      _
    $region59: #{tpu_custom_call.1} parent=1 // pred_check_branch
      %100 = sbr.rel (0) target = $region61
    $region60: #{tpu_custom_call.1} parent=1 // pred_region
      %101 = dma.done [#allocation11], 1024
    $region61: #{tpu_custom_call.1} parent=1 // pred_fallthru
      _
    %p103 = scmp.eq.s32.totalorder 0, 0
    // Predicated region
    $region62: #{tpu_custom_call.1} parent=1 // pred_check
      %p104 = pneg %p103
    $region63: #{tpu_custom_call.1} parent=1 // pred_check_branch
      %106 = sbr.rel (%p104) target = $region65
    $region64: #{tpu_custom_call.1} parent=1 // pred_region
      %107 = vst [vmem:[#allocation2] sm:$0xff] 0.0
      %108 = vst [vmem:[#allocation3] sm:$0xff] 0.0
    $region65: #{tpu_custom_call.1} parent=1 // pred_fallthru
      _
    %v109 = vld [vmem:[#allocation2] sm:$0xff]
    %v110 = vld [vmem:[#allocation4] sm:$0xf]
    %v111 = vld [vmem:[#allocation7] sm:$0xf]
    %v112 = vld [vmem:[#allocation7 + $0x4] sm:$0xf]
    %v113 = vld [vmem:[#allocation7 + $0x8] sm:$0xf]
    %v114 = vld [vmem:[#allocation7 + $0xc] sm:$0xf]
    %v115 = vld [vmem:[#allocation7 + $0x10] sm:$0xf]
    %v116 = vld [vmem:[#allocation7 + $0x14] sm:$0xf]
    %v117 = vld [vmem:[#allocation7 + $0x18] sm:$0xf]
    %v118 = vld [vmem:[#allocation7 + $0x1c] sm:$0xf]
    %v119 = vld [vmem:[#allocation7 + $0x20] sm:$0xf]
    %v120 = vld [vmem:[#allocation7 + $0x24] sm:$0xf]
    %v121 = vld [vmem:[#allocation7 + $0x28] sm:$0xf]
    %v122 = vld [vmem:[#allocation7 + $0x2c] sm:$0xf]
    %v123 = vld [vmem:[#allocation7 + $0x30] sm:$0xf]
    %v124 = vld [vmem:[#allocation7 + $0x34] sm:$0xf]
    %v125 = vld [vmem:[#allocation7 + $0x38] sm:$0xf]
    %v126 = vld [vmem:[#allocation7 + $0x3c] sm:$0xf]
    %v143 = vunpack.c.l.b16 %v111
    %v144 = vunpack.c.l.b16 %v112
    %v145 = vunpack.c.l.b16 %v113
    %v146 = vunpack.c.l.b16 %v114
    %v147 = vunpack.c.l.b16 %v115
    %v148 = vunpack.c.l.b16 %v116
    %v149 = vunpack.c.l.b16 %v117
    %v150 = vunpack.c.l.b16 %v118
    %v151 = vunpack.c.l.b16 %v119
    %v152 = vunpack.c.l.b16 %v120
    %v153 = vunpack.c.l.b16 %v121
    %v154 = vunpack.c.l.b16 %v122
    %v155 = vunpack.c.l.b16 %v123
    %v156 = vunpack.c.l.b16 %v124
    %v157 = vunpack.c.l.b16 %v125
    %v158 = vunpack.c.l.b16 %v126
    %v159 = vpack.c.b16 %v144, %v143
    %v160 = vpack.c.b16 %v146, %v145
    %v161 = vpack.c.b16 %v148, %v147
    %v162 = vpack.c.b16 %v150, %v149
    %v163 = vpack.c.b16 %v152, %v151
    %v164 = vpack.c.b16 %v154, %v153
    %v165 = vpack.c.b16 %v156, %v155
    %v166 = vpack.c.b16 %v158, %v157
    %175 = vmatprep.subr.bf16.mxu0 0
    %176 = vmatpush1.bf16.msra.mxu0 %v166
    %177 = vmatprep.subr.bf16.mxu0 0
    %178 = vmatpush1.bf16.msra.mxu0 %v165
    %179 = vmatprep.subr.bf16.mxu0 0
    %180 = vmatpush1.bf16.msra.mxu0 %v164
    %181 = vmatprep.subr.bf16.mxu0 0
    %182 = vmatpush1.bf16.msra.mxu0 %v163
    %183 = vmatprep.subr.bf16.mxu0 0
    %184 = vmatpush1.bf16.msra.mxu0 %v162
    %185 = vmatprep.subr.bf16.mxu0 0
    %186 = vmatpush1.bf16.msra.mxu0 %v161
    %187 = vmatprep.subr.bf16.mxu0 0
    %188 = vmatpush1.bf16.msra.mxu0 %v160
    %189 = vmatprep.subr.bf16.mxu0 0
    %190 = vmatpush1.bf16.msra.mxu0 %v159
    %191 = vmatprep.subr.bf16.mxu0 0
    %192 = vmatpush2.bf16.msra.mxu0 0
    %193 = vmatprep.subr.bf16.mxu0 0
    %194 = vmatpush2.bf16.msra.mxu0 0
    %195 = vmatprep.subr.bf16.mxu0 0
    %196 = vmatpush2.bf16.msra.mxu0 0
    %197 = vmatprep.subr.bf16.mxu0 0
    %198 = vmatpush2.bf16.msra.mxu0 0
    %199 = vmatprep.subr.bf16.mxu0 0
    %200 = vmatpush2.bf16.msra.mxu0 0
    %201 = vmatprep.subr.bf16.mxu0 0
    %202 = vmatpush2.bf16.msra.mxu0 0
    %203 = vmatprep.subr.bf16.mxu0 0
    %204 = vmatpush2.bf16.msra.mxu0 0
    %205 = vmatprep.subr.bf16.mxu0 0
    %206 = vmatpush2.bf16.msra.mxu0 0
    %207 = vmatprep.mubr.bf16.mxu0 0
    %208 = vmatmul.mubr.bf16.gmra.mxu0 %v110
    %v209 = vpop.f32.mrf.mxu0
    %v210 = vadd.f32 0.0, %v209
    %v211 = vpop.f32.mrf.mxu0
    %v212 = vpop.f32.mrf.mxu0
    %v213 = vpop.f32.mrf.mxu0
    %214 = vdwg.mxu0
    %v215 = vadd.f32 %v109, %v210
    %216 = vst [vmem:[#allocation2] sm:$0xff] %v215
    %v217 = vld [vmem:[#allocation3] sm:$0xff]
    %v218 = vld [vmem:[%s5] sm:$0xf]
    %v219 = vld [vmem:[#allocation10] sm:$0xf]
    %v220 = vld [vmem:[#allocation10 + $0x4] sm:$0xf]
    %v221 = vld [vmem:[#allocation10 + $0x8] sm:$0xf]
    %v222 = vld [vmem:[#allocation10 + $0xc] sm:$0xf]
    %v223 = vld [vmem:[#allocation10 + $0x10] sm:$0xf]
    %v224 = vld [vmem:[#allocation10 + $0x14] sm:$0xf]
    %v225 = vld [vmem:[#allocation10 + $0x18] sm:$0xf]
    %v226 = vld [vmem:[#allocation10 + $0x1c] sm:$0xf]
    %v227 = vld [vmem:[#allocation10 + $0x20] sm:$0xf]
    %v228 = vld [vmem:[#allocation10 + $0x24] sm:$0xf]
    %v229 = vld [vmem:[#allocation10 + $0x28] sm:$0xf]
    %v230 = vld [vmem:[#allocation10 + $0x2c] sm:$0xf]
    %v231 = vld [vmem:[#allocation10 + $0x30] sm:$0xf]
    %v232 = vld [vmem:[#allocation10 + $0x34] sm:$0xf]
    %v233 = vld [vmem:[#allocation10 + $0x38] sm:$0xf]
    %v234 = vld [vmem:[#allocation10 + $0x3c] sm:$0xf]
    %v251 = vunpack.c.l.b16 %v219
    %v252 = vunpack.c.l.b16 %v220
    %v253 = vunpack.c.l.b16 %v221
    %v254 = vunpack.c.l.b16 %v222
    %v255 = vunpack.c.l.b16 %v223
    %v256 = vunpack.c.l.b16 %v224
    %v257 = vunpack.c.l.b16 %v225
    %v258 = vunpack.c.l.b16 %v226
    %v259 = vunpack.c.l.b16 %v227
    %v260 = vunpack.c.l.b16 %v228
    %v261 = vunpack.c.l.b16 %v229
    %v262 = vunpack.c.l.b16 %v230
    %v263 = vunpack.c.l.b16 %v231
    %v264 = vunpack.c.l.b16 %v232
    %v265 = vunpack.c.l.b16 %v233
    %v266 = vunpack.c.l.b16 %v234
    %v267 = vpack.c.b16 %v252, %v251
    %v268 = vpack.c.b16 %v254, %v253
    %v269 = vpack.c.b16 %v256, %v255
    %v270 = vpack.c.b16 %v258, %v257
    %v271 = vpack.c.b16 %v260, %v259
    %v272 = vpack.c.b16 %v262, %v261
    %v273 = vpack.c.b16 %v264, %v263
    %v274 = vpack.c.b16 %v266, %v265
    %283 = vmatprep.subr.bf16.mxu0 0
    %284 = vmatpush1.bf16.msra.mxu0 %v274
    %285 = vmatprep.subr.bf16.mxu0 0
    %286 = vmatpush1.bf16.msra.mxu0 %v273
    %287 = vmatprep.subr.bf16.mxu0 0
    %288 = vmatpush1.bf16.msra.mxu0 %v272
    %289 = vmatprep.subr.bf16.mxu0 0
    %290 = vmatpush1.bf16.msra.mxu0 %v271
    %291 = vmatprep.subr.bf16.mxu0 0
    %292 = vmatpush1.bf16.msra.mxu0 %v270
    %293 = vmatprep.subr.bf16.mxu0 0
    %294 = vmatpush1.bf16.msra.mxu0 %v269
    %295 = vmatprep.subr.bf16.mxu0 0
    %296 = vmatpush1.bf16.msra.mxu0 %v268
    %297 = vmatprep.subr.bf16.mxu0 0
    %298 = vmatpush1.bf16.msra.mxu0 %v267
    %299 = vmatprep.subr.bf16.mxu0 0
    %300 = vmatpush2.bf16.msra.mxu0 0
    %301 = vmatprep.subr.bf16.mxu0 0
    %302 = vmatpush2.bf16.msra.mxu0 0
    %303 = vmatprep.subr.bf16.mxu0 0
    %304 = vmatpush2.bf16.msra.mxu0 0
    %305 = vmatprep.subr.bf16.mxu0 0
    %306 = vmatpush2.bf16.msra.mxu0 0
    %307 = vmatprep.subr.bf16.mxu0 0
    %308 = vmatpush2.bf16.msra.mxu0 0
    %309 = vmatprep.subr.bf16.mxu0 0
    %310 = vmatpush2.bf16.msra.mxu0 0
    %311 = vmatprep.subr.bf16.mxu0 0
    %312 = vmatpush2.bf16.msra.mxu0 0
    %313 = vmatprep.subr.bf16.mxu0 0
    %314 = vmatpush2.bf16.msra.mxu0 0
    %315 = vmatprep.mubr.bf16.mxu0 0
    %316 = vmatmul.mubr.bf16.gmra.mxu0 %v218
    %v317 = vpop.f32.mrf.mxu0
    %v318 = vadd.f32 0.0, %v317
    %v319 = vpop.f32.mrf.mxu0
    %v320 = vpop.f32.mrf.mxu0
    %v321 = vpop.f32.mrf.mxu0
    %322 = vdwg.mxu0
    %v323 = vadd.f32 %v217, %v318
    %324 = vst [vmem:[#allocation3] sm:$0xff] %v323
    // Predicated region
    $region66: #{tpu_custom_call.1} parent=1 // pred_check
      %p325 = pneg %p103
    $region67: #{tpu_custom_call.1} parent=1 // pred_check_branch
      %327 = sbr.rel (%p325) target = $region69
    $region68: #{tpu_custom_call.1} parent=1 // pred_region
      %v328 = vld [vmem:[#allocation2] sm:$0xff]
      %v329 = vld [vmem:[%s2] sm:$0x1]
      %v331 = vlaneseq
      %v332 = vshrl.u32 %v331, 7
      %v333 = vsub.s32 0, %v332
      %v334 = vrot.slane %v329, %v333
      %v336 = vadd.f32 %v328, %v334
      %v337 = vmax.f32 %v336, 0.0
      %v338 = vpack.c.bf16 %v337, %v337
      %v339 = vld [vmem:[#allocation9] sm:$0xf]
      %v340 = vld [vmem:[#allocation9 + $0x4] sm:$0xf]
      %v341 = vld [vmem:[#allocation9 + $0x8] sm:$0xf]
      %v342 = vld [vmem:[#allocation9 + $0xc] sm:$0xf]
      %v343 = vld [vmem:[#allocation9 + $0x10] sm:$0xf]
      %v344 = vld [vmem:[#allocation9 + $0x14] sm:$0xf]
      %v345 = vld [vmem:[#allocation9 + $0x18] sm:$0xf]
      %v346 = vld [vmem:[#allocation9 + $0x1c] sm:$0xf]
      %v347 = vld [vmem:[#allocation9 + $0x20] sm:$0xf]
      %v348 = vld [vmem:[#allocation9 + $0x24] sm:$0xf]
      %v349 = vld [vmem:[#allocation9 + $0x28] sm:$0xf]
      %v350 = vld [vmem:[#allocation9 + $0x2c] sm:$0xf]
      %v351 = vld [vmem:[#allocation9 + $0x30] sm:$0xf]
      %v352 = vld [vmem:[#allocation9 + $0x34] sm:$0xf]
      %v353 = vld [vmem:[#allocation9 + $0x38] sm:$0xf]
      %v354 = vld [vmem:[#allocation9 + $0x3c] sm:$0xf]
      %v355 = vld [vmem:[%s4] sm:$0x1]
      %v357 = vlaneseq
      %v358 = vshrl.u32 %v357, 7
      %v359 = vsub.s32 0, %v358
      %v360 = vrot.slane %v355, %v359
      %v378 = vunpack.c.l.b16 %v339
      %v379 = vunpack.c.l.b16 %v340
      %v380 = vunpack.c.l.b16 %v341
      %v381 = vunpack.c.l.b16 %v342
      %v382 = vunpack.c.l.b16 %v343
      %v383 = vunpack.c.l.b16 %v344
      %v384 = vunpack.c.l.b16 %v345
      %v385 = vunpack.c.l.b16 %v346
      %v386 = vunpack.c.l.b16 %v347
      %v387 = vunpack.c.l.b16 %v348
      %v388 = vunpack.c.l.b16 %v349
      %v389 = vunpack.c.l.b16 %v350
      %v390 = vunpack.c.l.b16 %v351
      %v391 = vunpack.c.l.b16 %v352
      %v392 = vunpack.c.l.b16 %v353
      %v393 = vunpack.c.l.b16 %v354
      %v394 = vpack.c.b16 %v379, %v378
      %v395 = vpack.c.b16 %v381, %v380
      %v396 = vpack.c.b16 %v383, %v382
      %v397 = vpack.c.b16 %v385, %v384
      %v398 = vpack.c.b16 %v387, %v386
      %v399 = vpack.c.b16 %v389, %v388
      %v400 = vpack.c.b16 %v391, %v390
      %v401 = vpack.c.b16 %v393, %v392
      %410 = vmatprep.subr.bf16.mxu0 0
      %411 = vmatpush1.bf16.msra.mxu0 %v401
      %412 = vmatprep.subr.bf16.mxu0 0
      %413 = vmatpush1.bf16.msra.mxu0 %v400
      %414 = vmatprep.subr.bf16.mxu0 0
      %415 = vmatpush1.bf16.msra.mxu0 %v399
      %416 = vmatprep.subr.bf16.mxu0 0
      %417 = vmatpush1.bf16.msra.mxu0 %v398
      %418 = vmatprep.subr.bf16.mxu0 0
      %419 = vmatpush1.bf16.msra.mxu0 %v397
      %420 = vmatprep.subr.bf16.mxu0 0
      %421 = vmatpush1.bf16.msra.mxu0 %v396
      %422 = vmatprep.subr.bf16.mxu0 0
      %423 = vmatpush1.bf16.msra.mxu0 %v395
      %424 = vmatprep.subr.bf16.mxu0 0
      %425 = vmatpush1.bf16.msra.mxu0 %v394
      %426 = vmatprep.subr.bf16.mxu0 0
      %427 = vmatpush2.bf16.msra.mxu0 0
      %428 = vmatprep.subr.bf16.mxu0 0
      %429 = vmatpush2.bf16.msra.mxu0 0
      %430 = vmatprep.subr.bf16.mxu0 0
      %431 = vmatpush2.bf16.msra.mxu0 0
      %432 = vmatprep.subr.bf16.mxu0 0
      %433 = vmatpush2.bf16.msra.mxu0 0
      %434 = vmatprep.subr.bf16.mxu0 0
      %435 = vmatpush2.bf16.msra.mxu0 0
      %436 = vmatprep.subr.bf16.mxu0 0
      %437 = vmatpush2.bf16.msra.mxu0 0
      %438 = vmatprep.subr.bf16.mxu0 0
      %439 = vmatpush2.bf16.msra.mxu0 0
      %440 = vmatprep.subr.bf16.mxu0 0
      %441 = vmatpush2.bf16.msra.mxu0 0
      %442 = vmatprep.mubr.bf16.mxu0 0
      %443 = vmatmul.mubr.bf16.gmra.mxu0 %v338
      %v444 = vpop.f32.mrf.mxu0
      %v445 = vadd.f32 %v360, %v444
      %v446 = vpop.f32.mrf.mxu0
      %v447 = vpop.f32.mrf.mxu0
      %v448 = vpop.f32.mrf.mxu0
      %449 = vdwg.mxu0
      %450 = vst [vmem:[#allocation13] sm:$0xff] %v445
      %v451 = vld [vmem:[#allocation3] sm:$0xff]
      %v452 = vld [vmem:[%s7] sm:$0x1]
      %v454 = vlaneseq
      %v455 = vshrl.u32 %v454, 7
      %v456 = vsub.s32 0, %v455
      %v457 = vrot.slane %v452, %v456
      %v459 = vadd.f32 %v451, %v457
      %v460 = vmax.f32 %v459, 0.0
      %v461 = vpack.c.bf16 %v460, %v460
      %v462 = vld [vmem:[#allocation12] sm:$0xf]
      %v463 = vld [vmem:[#allocation12 + $0x4] sm:$0xf]
      %v464 = vld [vmem:[#allocation12 + $0x8] sm:$0xf]
      %v465 = vld [vmem:[#allocation12 + $0xc] sm:$0xf]
      %v466 = vld [vmem:[#allocation12 + $0x10] sm:$0xf]
      %v467 = vld [vmem:[#allocation12 + $0x14] sm:$0xf]
      %v468 = vld [vmem:[#allocation12 + $0x18] sm:$0xf]
      %v469 = vld [vmem:[#allocation12 + $0x1c] sm:$0xf]
      %v470 = vld [vmem:[#allocation12 + $0x20] sm:$0xf]
      %v471 = vld [vmem:[#allocation12 + $0x24] sm:$0xf]
      %v472 = vld [vmem:[#allocation12 + $0x28] sm:$0xf]
      %v473 = vld [vmem:[#allocation12 + $0x2c] sm:$0xf]
      %v474 = vld [vmem:[#allocation12 + $0x30] sm:$0xf]
      %v475 = vld [vmem:[#allocation12 + $0x34] sm:$0xf]
      %v476 = vld [vmem:[#allocation12 + $0x38] sm:$0xf]
      %v477 = vld [vmem:[#allocation12 + $0x3c] sm:$0xf]
      %v478 = vld [vmem:[%s9] sm:$0x1]
      %v480 = vlaneseq
      %v481 = vshrl.u32 %v480, 7
      %v482 = vsub.s32 0, %v481
      %v483 = vrot.slane %v478, %v482
      %v501 = vunpack.c.l.b16 %v462
      %v502 = vunpack.c.l.b16 %v463
      %v503 = vunpack.c.l.b16 %v464
      %v504 = vunpack.c.l.b16 %v465
      %v505 = vunpack.c.l.b16 %v466
      %v506 = vunpack.c.l.b16 %v467
      %v507 = vunpack.c.l.b16 %v468
      %v508 = vunpack.c.l.b16 %v469
      %v509 = vunpack.c.l.b16 %v470
      %v510 = vunpack.c.l.b16 %v471
      %v511 = vunpack.c.l.b16 %v472
      %v512 = vunpack.c.l.b16 %v473
      %v513 = vunpack.c.l.b16 %v474
      %v514 = vunpack.c.l.b16 %v475
      %v515 = vunpack.c.l.b16 %v476
      %v516 = vunpack.c.l.b16 %v477
      %v517 = vpack.c.b16 %v502, %v501
      %v518 = vpack.c.b16 %v504, %v503
      %v519 = vpack.c.b16 %v506, %v505
      %v520 = vpack.c.b16 %v508, %v507
      %v521 = vpack.c.b16 %v510, %v509
      %v522 = vpack.c.b16 %v512, %v511
      %v523 = vpack.c.b16 %v514, %v513
      %v524 = vpack.c.b16 %v516, %v515
      %533 = vmatprep.subr.bf16.mxu0 0
      %534 = vmatpush1.bf16.msra.mxu0 %v524
      %535 = vmatprep.subr.bf16.mxu0 0
      %536 = vmatpush1.bf16.msra.mxu0 %v523
      %537 = vmatprep.subr.bf16.mxu0 0
      %538 = vmatpush1.bf16.msra.mxu0 %v522
      %539 = vmatprep.subr.bf16.mxu0 0
      %540 = vmatpush1.bf16.msra.mxu0 %v521
      %541 = vmatprep.subr.bf16.mxu0 0
      %542 = vmatpush1.bf16.msra.mxu0 %v520
      %543 = vmatprep.subr.bf16.mxu0 0
      %544 = vmatpush1.bf16.msra.mxu0 %v519
      %545 = vmatprep.subr.bf16.mxu0 0
      %546 = vmatpush1.bf16.msra.mxu0 %v518
      %547 = vmatprep.subr.bf16.mxu0 0
      %548 = vmatpush1.bf16.msra.mxu0 %v517
      %549 = vmatprep.subr.bf16.mxu0 0
      %550 = vmatpush2.bf16.msra.mxu0 0
      %551 = vmatprep.subr.bf16.mxu0 0
      %552 = vmatpush2.bf16.msra.mxu0 0
      %553 = vmatprep.subr.bf16.mxu0 0
      %554 = vmatpush2.bf16.msra.mxu0 0
      %555 = vmatprep.subr.bf16.mxu0 0
      %556 = vmatpush2.bf16.msra.mxu0 0
      %557 = vmatprep.subr.bf16.mxu0 0
      %558 = vmatpush2.bf16.msra.mxu0 0
      %559 = vmatprep.subr.bf16.mxu0 0
      %560 = vmatpush2.bf16.msra.mxu0 0
      %561 = vmatprep.subr.bf16.mxu0 0
      %562 = vmatpush2.bf16.msra.mxu0 0
      %563 = vmatprep.subr.bf16.mxu0 0
      %564 = vmatpush2.bf16.msra.mxu0 0
      %565 = vmatprep.mubr.bf16.mxu0 0
      %566 = vmatmul.mubr.bf16.gmra.mxu0 %v461
      %v567 = vpop.f32.mrf.mxu0
      %v568 = vadd.f32 %v483, %v567
      %v569 = vpop.f32.mrf.mxu0
      %v570 = vpop.f32.mrf.mxu0
      %v571 = vpop.f32.mrf.mxu0
      %572 = vdwg.mxu0
      %573 = vst [vmem:[#allocation13 + $0x8] sm:$0xff] %v568
    $region69: #{tpu_custom_call.1} parent=1 // pred_fallthru
      _
    // Predicated region
    $region70: #{tpu_custom_call.1} parent=1 // pred_check
      _
    $region71: #{tpu_custom_call.1} parent=1 // pred_check_branch
      %575 = sbr.rel (0) target = $region73
    $region72: #{tpu_custom_call.1} parent=1 // pred_region
      %s577 = ssub.s32 256, 256
      %578 = vsyncadd [#allocation6], %s577
      %s580 = sshll.u32 [#allocation13], 4
      %s581 = int_to_ptr.vmem [resolvable:$true] %s580
      %583 = dma.vmem_to_hbm [thread:$0]  %s581, 256, %s10, [#allocation6]
    $region73: #{tpu_custom_call.1} parent=1 // pred_fallthru
      _
    // Predicated region
    $region74: #{tpu_custom_call.1} parent=1 // pred_check
      _
    $region75: #{tpu_custom_call.1} parent=1 // pred_check_branch
      %585 = sbr.rel (0) target = $region77
    $region76: #{tpu_custom_call.1} parent=1 // pred_region
      %586 = dma.done [#allocation6], 256
    $region77: #{tpu_custom_call.1} parent=1 // pred_fallthru
      _
    %587 = vsyncpa [#allocation5], 1
    %588 = vsyncpa [#allocation8], 1
    %589 = vsyncpa [#allocation11], 1
    %590 = vsyncpa [#allocation6], 1

</llo_original>
